<compile_context>
chip_gen: v6e
topology: v6e:2x2x1
jax: 0.10.0
libtpu: 0.0.40
codegen_flags: <defaults>
</compile_context>

<pallas_src>
import jax
import jax.numpy as jnp
from jax.experimental import pallas as pl
from jax.experimental.pallas import tpu as pltpu


def _round_up(x, m):
    return (x + m - 1) // m * m


def _mlp_kernel(x_ref, w1_ref, b1_ref, w2_ref, b2_ref, o_ref):
    # x_ref : (TB, Kp)     w1_ref : (Kp, H)     b1_ref : (1, H)
    # w2_ref: (H, Cp)      b2_ref : (1, Cp)     o_ref  : (TB, Cp)
    x = x_ref[...]
    h = jnp.dot(x, w1_ref[...], preferred_element_type=jnp.float32) + b1_ref[...]
    h = jnp.maximum(h, 0.0)                      # ReLU (Dropout: identity in eval mode)
    out = jnp.dot(h, w2_ref[...], preferred_element_type=jnp.float32) + b2_ref[...]
    o_ref[...] = out.astype(o_ref.dtype)


def mc_model_forward(x, w1, b1, w2, b2):
    """x: (B, 1, feature_num, window_size) f32 -> logits (B, class_num) f32."""
    B = x.shape[0]
    x_flat = x.reshape(B, -1)                    # == torch .view(B, -1), row-major
    in_dim = x_flat.shape[1]                     # 300
    hidden = w1.shape[1]                         # 128
    class_num = w2.shape[1]                      # 3

    # --- pad every dimension to the native (8, 128) tile grid -----------------
    k_pad = _round_up(in_dim, 128)               # 300 -> 384
    c_pad = _round_up(class_num, 128)            # 3   -> 128
    b_pad = _round_up(B, 8)                      # 2   -> 8
    if b_pad >= 128:
        b_pad = _round_up(b_pad, 128)
        tile_b = 128
    else:
        tile_b = b_pad

    x_p = jnp.zeros((b_pad, k_pad), jnp.float32).at[:B, :in_dim].set(x_flat)
    w1_p = jnp.zeros((k_pad, hidden), jnp.float32).at[:in_dim, :].set(w1)
    b1_p = b1.reshape(1, hidden).astype(jnp.float32)
    # Padded class columns of w2/b2 are zero so padded logits are exactly 0.
    w2_p = jnp.zeros((hidden, c_pad), jnp.float32).at[:, :class_num].set(w2)
    b2_p = jnp.zeros((1, c_pad), jnp.float32).at[:, :class_num].set(b2.reshape(1, class_num))

    grid = (b_pad // tile_b,)

    out_p = pl.pallas_call(
        _mlp_kernel,
        out_shape=jax.ShapeDtypeStruct((b_pad, c_pad), jnp.float32),
        grid=grid,
        in_specs=[
            pl.BlockSpec((tile_b, k_pad), lambda i: (i, 0)),   # x, tiled on batch
            pl.BlockSpec((k_pad, hidden), lambda i: (0, 0)),   # w1, resident
            pl.BlockSpec((1, hidden), lambda i: (0, 0)),       # b1
            pl.BlockSpec((hidden, c_pad), lambda i: (0, 0)),   # w2 (padded cols)
            pl.BlockSpec((1, c_pad), lambda i: (0, 0)),        # b2 (padded cols)
        ],
        out_specs=pl.BlockSpec((tile_b, c_pad), lambda i: (i, 0)),
        compiler_params=pltpu.CompilerParams(
            dimension_semantics=("parallel",),   # shards batch across TCs on v7x
        ),
    )(x_p, w1_p, b1_p, w2_p, b2_p)

    # Strip batch/class padding outside the kernel.
    return out_p[:B, :class_num]


def _init_linear(key, fan_in, fan_out):
    # PyTorch nn.Linear default init: U(-1/sqrt(fan_in), 1/sqrt(fan_in))
    kw, kb = jax.random.split(key)
    bound = 1.0 / (fan_in ** 0.5)
    w = jax.random.uniform(kw, (fan_in, fan_out), jnp.float32, -bound, bound)
    b = jax.random.uniform(kb, (fan_out,), jnp.float32, -bound, bound)
    return w, b


if __name__ == "__main__":
    class_num, feature_num, window_size = 3, 10, 30
    batch = 2

    key = jax.random.PRNGKey(0)
    kx, k1, k2 = jax.random.split(key, 3)

    # Input mirrors the NCHW conv-style input the model expects: (B, 1, F, W)
    x = jax.random.normal(kx, (batch, 1, feature_num, window_size), jnp.float32)

    in_dim = 1 * feature_num * window_size       # 300
    w1, b1 = _init_linear(k1, in_dim, 128)
    w2, b2 = _init_linear(k2, 128, class_num)

    out = mc_model_forward(x, w1, b1, w2, b2)
    out = jax.block_until_ready(out)

    # Sanity check against plain-JAX reference of the same forward.
    x_flat = x.reshape(batch, -1)
    ref = jnp.maximum(x_flat @ w1 + b1, 0.0) @ w2 + b2
    assert out.shape == (batch, class_num)
    assert jnp.allclose(out, ref, atol=1e-4, rtol=1e-4)

    print("KERNEL_OK")
</pallas_src>

<mosaic_0001>
module attributes {stable_mosaic.version = 11 : i64} {
  func.func @_mlp_kernel(%arg0: i32, %arg1: memref<8x384xf32, #tpu.memory_space<vmem>>, %arg2: memref<384x128xf32, #tpu.memory_space<vmem>>, %arg3: memref<1x128xf32, #tpu.memory_space<vmem>>, %arg4: memref<128x128xf32, #tpu.memory_space<vmem>>, %arg5: memref<1x128xf32, #tpu.memory_space<vmem>>, %arg6: memref<8x128xf32, #tpu.memory_space<vmem>>) attributes {dimension_semantics = [#tpu.dimension_semantics<parallel>], iteration_bounds = array<i64: 1>, scalar_prefetch = 0 : i64, scratch_operands = 0 : i64, tpu.core_type = #tpu.core_type<tc>, window_params = [{transform_indices = @transform_0, window_bounds = array<i64: 8, 384>}, {pipeline_mode = #tpu.pipeline_mode<synchronous>, transform_indices = @transform_1, window_bounds = array<i64: 384, 128>}, {pipeline_mode = #tpu.pipeline_mode<synchronous>, transform_indices = @transform_2, window_bounds = array<i64: 1, 128>}, {pipeline_mode = #tpu.pipeline_mode<synchronous>, transform_indices = @transform_3, window_bounds = array<i64: 128, 128>}, {pipeline_mode = #tpu.pipeline_mode<synchronous>, transform_indices = @transform_4, window_bounds = array<i64: 1, 128>}, {transform_indices = @transform_5, window_bounds = array<i64: 8, 128>}]} {
    %c0 = arith.constant 0 : index
    %c0_0 = arith.constant 0 : index
    %0 = vector.load %arg1[%c0, %c0_0] : memref<8x384xf32, #tpu.memory_space<vmem>>, vector<8x384xf32>
    %c0_1 = arith.constant 0 : index
    %c0_2 = arith.constant 0 : index
    %1 = vector.load %arg2[%c0_1, %c0_2] : memref<384x128xf32, #tpu.memory_space<vmem>>, vector<384x128xf32>
    %cst = arith.constant dense<0.000000e+00> : vector<8x128xf32>
    %2 = tpu.matmul %0, %1, %cst {dimension_numbers = #tpu.dot_dimension_numbers<[1], [0], [0], [1], [0, 0, 1, 1], [], []>} : vector<8x384xf32>, vector<384x128xf32>, vector<8x128xf32> -> vector<8x128xf32>
    %c0_3 = arith.constant 0 : index
    %c0_4 = arith.constant 0 : index
    %3 = vector.load %arg3[%c0_3, %c0_4] : memref<1x128xf32, #tpu.memory_space<vmem>>, vector<1x128xf32>
    %4 = vector.broadcast %3 : vector<1x128xf32> to vector<8x128xf32>
    %5 = arith.addf %2, %4 : vector<8x128xf32>
    %cst_5 = arith.constant 0.000000e+00 : f32
    %6 = vector.broadcast %cst_5 : f32 to vector<8x128xf32>
    %7 = arith.maximumf %5, %6 : vector<8x128xf32>
    %c0_6 = arith.constant 0 : index
    %c0_7 = arith.constant 0 : index
    %8 = vector.load %arg4[%c0_6, %c0_7] : memref<128x128xf32, #tpu.memory_space<vmem>>, vector<128x128xf32>
    %cst_8 = arith.constant dense<0.000000e+00> : vector<8x128xf32>
    %9 = tpu.matmul %7, %8, %cst_8 {dimension_numbers = #tpu.dot_dimension_numbers<[1], [0], [0], [1], [0, 0, 1, 1], [], []>} : vector<8x128xf32>, vector<128x128xf32>, vector<8x128xf32> -> vector<8x128xf32>
    %c0_9 = arith.constant 0 : index
    %c0_10 = arith.constant 0 : index
    %10 = vector.load %arg5[%c0_9, %c0_10] : memref<1x128xf32, #tpu.memory_space<vmem>>, vector<1x128xf32>
    %11 = vector.broadcast %10 : vector<1x128xf32> to vector<8x128xf32>
    %12 = arith.addf %9, %11 : vector<8x128xf32>
    %c0_11 = arith.constant 0 : index
    %c0_12 = arith.constant 0 : index
    %13 = vector.load %arg6[%c0_11, %c0_12] : memref<8x128xf32, #tpu.memory_space<vmem>>, vector<8x128xf32>
    tpu.vector_store %arg6[%c0_11, %c0_12], %12 {strides = array<i32>} : memref<8x128xf32, #tpu.memory_space<vmem>>, vector<8x128xf32>,
    return
  }
  func.func @transform_0(%arg0: i32) -> (i32, i32) {
    %c0_i32 = arith.constant 0 : i32
    %c0_i32_0 = arith.constant 0 : i32
    return %arg0, %c0_i32 : i32, i32
  }
  func.func @transform_1(%arg0: i32) -> (i32, i32) {
    %c0_i32 = arith.constant 0 : i32
    %c0_i32_0 = arith.constant 0 : i32
    %c0_i32_1 = arith.constant 0 : i32
    return %c0_i32, %c0_i32_0 : i32, i32
  }
  func.func @transform_2(%arg0: i32) -> (i32, i32) {
    %c0_i32 = arith.constant 0 : i32
    %c0_i32_0 = arith.constant 0 : i32
    %c0_i32_1 = arith.constant 0 : i32
    return %c0_i32, %c0_i32_0 : i32, i32
  }
  func.func @transform_3(%arg0: i32) -> (i32, i32) {
    %c0_i32 = arith.constant 0 : i32
    %c0_i32_0 = arith.constant 0 : i32
    %c0_i32_1 = arith.constant 0 : i32
    return %c0_i32, %c0_i32_0 : i32, i32
  }
  func.func @transform_4(%arg0: i32) -> (i32, i32) {
    %c0_i32 = arith.constant 0 : i32
    %c0_i32_0 = arith.constant 0 : i32
    %c0_i32_1 = arith.constant 0 : i32
    return %c0_i32, %c0_i32_0 : i32, i32
  }
  func.func @transform_5(%arg0: i32) -> (i32, i32) {
    %c0_i32 = arith.constant 0 : i32
    %c0_i32_0 = arith.constant 0 : i32
    return %arg0, %c0_i32 : i32, i32
  }
}

</mosaic_0001>

<llo_original>
// kernel: tpu_custom_call.1
$region0: #{tpu_custom_call.1}
  #allocation0 [shape = 'u32[]', space=smem, size = 0x4, offset = 0x4, fixed_abs, tag = 'smem constant byte address 0x4 - core index']
  #allocation1 [shape = 'u32[144,128]{1,0:T(1,128)}', space=vmem, size = 0x12000, scoped, tag = 'internal scratch']
  %s0 = inlined_call_operand.hbm [shape: f32[8,384], index: 0, kind: input, shape index: {}]
  %s1 = inlined_call_operand.hbm [shape: f32[384,128], index: 1, kind: input, shape index: {}]
  %s2 = inlined_call_operand.vmem [shape: f32[1,128], index: 2, kind: input, shape index: {}]
  %s3 = inlined_call_operand.hbm [shape: f32[128,128], index: 3, kind: input, shape index: {}]
  %s4 = inlined_call_operand.vmem [shape: f32[1,128], index: 4, kind: input, shape index: {}]
  %s5 = inlined_call_operand.hbm [shape: f32[8,128], index: 5, kind: output, shape index: {}]
  %s6 = sld [smem:[#allocation0]]
  $region42: #{tpu_custom_call.1} parent=0
    _
  %s8 = ssub.s32 1, %s6
  %s9 = scalar_select 0, %s8, %s6
  $region1: #{tpu_custom_call.1} parent=0
    #allocation2 [shape = 'u8[12288]{0}', space=vmem, size = 0x3000, scoped, tag = 'input window, operand 0, single buffered']
    #allocation3 [shape = 's32[1]{0}', space=sflag, size = 0x4, scoped, tag = 'scoped memory for tpu_custom_call.1']
    #allocation4 [shape = 's32[1]{0}', space=sflag, size = 0x4, scoped, tag = 'scoped memory for tpu_custom_call.1']
    #allocation5 [shape = 'u8[196608]{0}', space=vmem, size = 0x30000, scoped, tag = 'input window, operand 1, single buffered']
    #allocation6 [shape = 's32[1]{0}', space=sflag, size = 0x4, scoped, tag = 'scoped memory for tpu_custom_call.1']
    #allocation7 [shape = 'u8[65536]{0}', space=vmem, size = 0x10000, scoped, tag = 'input window, operand 3, single buffered']
    #allocation8 [shape = 'u8[4096]{0}', space=vmem, size = 0x1000, scoped, tag = 'output window, operand 0, single buffered']
    %10 = vsyncpa [#allocation3], 0
    %11 = vsyncpa [#allocation6], 0
    %12 = vsyncpa [#allocation4], 0
    // Predicated region
    $region2: #{tpu_custom_call.1} parent=1 // pred_check
      _
    $region3: #{tpu_custom_call.1} parent=1 // pred_check_branch
      %14 = sbr.rel (0) target = $region5
    $region4: #{tpu_custom_call.1} parent=1 // pred_region
      %s16 = ssub.s32 384, 384
      %17 = vsyncadd [#allocation3], %s16
      %s19 = sshll.u32 [#allocation2], 4
      %s20 = int_to_ptr.vmem [resolvable:$true] %s19
      %22 = dma.hbm_to_vmem [thread:$0]  %s0, 384, %s20, [#allocation3]
    $region5: #{tpu_custom_call.1} parent=1 // pred_fallthru
      _
    // Predicated region
    $region6: #{tpu_custom_call.1} parent=1 // pred_check
      _
    $region7: #{tpu_custom_call.1} parent=1 // pred_check_branch
      %24 = sbr.rel (0) target = $region9
    $region8: #{tpu_custom_call.1} parent=1 // pred_region
      %s26 = ssub.s32 6144, 6144
      %27 = vsyncadd [#allocation6], %s26
      %s28 = sshll.u32 [#allocation5], 4
      %s29 = int_to_ptr.vmem [resolvable:$true] %s28
      %34 = dma.hbm_to_vmem [thread:$0]  %s1, 6144, %s29, [#allocation6], 128, 128, 8
    $region9: #{tpu_custom_call.1} parent=1 // pred_fallthru
      _
    // Predicated region
    $region10: #{tpu_custom_call.1} parent=1 // pred_check
      _
    $region11: #{tpu_custom_call.1} parent=1 // pred_check_branch
      %36 = sbr.rel (0) target = $region13
    $region12: #{tpu_custom_call.1} parent=1 // pred_region
      _
    $region13: #{tpu_custom_call.1} parent=1 // pred_fallthru
      _
    // Predicated region
    $region14: #{tpu_custom_call.1} parent=1 // pred_check
      _
    $region15: #{tpu_custom_call.1} parent=1 // pred_check_branch
      %38 = sbr.rel (0) target = $region17
    $region16: #{tpu_custom_call.1} parent=1 // pred_region
      %s40 = ssub.s32 2048, 2048
      %41 = vsyncadd [#allocation6], %s40
      %s42 = sshll.u32 [#allocation7], 4
      %s43 = int_to_ptr.vmem [resolvable:$true] %s42
      %48 = dma.hbm_to_vmem [thread:$0]  %s3, 2048, %s43, [#allocation6], 128, 128, 8
    $region17: #{tpu_custom_call.1} parent=1 // pred_fallthru
      _
    // Predicated region
    $region18: #{tpu_custom_call.1} parent=1 // pred_check
      _
    $region19: #{tpu_custom_call.1} parent=1 // pred_check_branch
      %50 = sbr.rel (0) target = $region21
    $region20: #{tpu_custom_call.1} parent=1 // pred_region
      _
    $region21: #{tpu_custom_call.1} parent=1 // pred_fallthru
      _
    // Predicated region
    $region22: #{tpu_custom_call.1} parent=1 // pred_check
      _
    $region23: #{tpu_custom_call.1} parent=1 // pred_check_branch
      %52 = sbr.rel (0) target = $region25
    $region24: #{tpu_custom_call.1} parent=1 // pred_region
      %53 = dma.done [#allocation3], 384
    $region25: #{tpu_custom_call.1} parent=1 // pred_fallthru
      _
    // Predicated region
    $region26: #{tpu_custom_call.1} parent=1 // pred_check
      _
    $region27: #{tpu_custom_call.1} parent=1 // pred_check_branch
      %55 = sbr.rel (0) target = $region29
    $region28: #{tpu_custom_call.1} parent=1 // pred_region
      %56 = dma.done [#allocation6], 6144
    $region29: #{tpu_custom_call.1} parent=1 // pred_fallthru
      _
    // Predicated region
    $region30: #{tpu_custom_call.1} parent=1 // pred_check
      _
    $region31: #{tpu_custom_call.1} parent=1 // pred_check_branch
      %58 = sbr.rel (0) target = $region33
    $region32: #{tpu_custom_call.1} parent=1 // pred_region
      %59 = dma.done [#allocation6], 2048
    $region33: #{tpu_custom_call.1} parent=1 // pred_fallthru
      _
    %v60 = vld [vmem:[#allocation2] sm:$0xff]
    %v61 = vld [vmem:[#allocation2 + $0x8] sm:$0xff]
    %v62 = vld [vmem:[#allocation2 + $0x10] sm:$0xff]
    %v63 = vld [vmem:[#allocation5] sm:$0xff]
    %v64 = vld [vmem:[#allocation5 + $0x8] sm:$0xff]
    %v65 = vld [vmem:[#allocation5 + $0x10] sm:$0xff]
    %v66 = vld [vmem:[#allocation5 + $0x18] sm:$0xff]
    %v67 = vld [vmem:[#allocation5 + $0x20] sm:$0xff]
    %v68 = vld [vmem:[#allocation5 + $0x28] sm:$0xff]
    %v69 = vld [vmem:[#allocation5 + $0x30] sm:$0xff]
    %v70 = vld [vmem:[#allocation5 + $0x38] sm:$0xff]
    %v71 = vld [vmem:[#allocation5 + $0x40] sm:$0xff]
    %v72 = vld [vmem:[#allocation5 + $0x48] sm:$0xff]
    %v73 = vld [vmem:[#allocation5 + $0x50] sm:$0xff]
    %v74 = vld [vmem:[#allocation5 + $0x58] sm:$0xff]
    %v75 = vld [vmem:[#allocation5 + $0x60] sm:$0xff]
    %v76 = vld [vmem:[#allocation5 + $0x68] sm:$0xff]
    %v77 = vld [vmem:[#allocation5 + $0x70] sm:$0xff]
    %v78 = vld [vmem:[#allocation5 + $0x78] sm:$0xff]
    %v79 = vld [vmem:[#allocation5 + $0x80] sm:$0xff]
    %v80 = vld [vmem:[#allocation5 + $0x88] sm:$0xff]
    %v81 = vld [vmem:[#allocation5 + $0x90] sm:$0xff]
    %v82 = vld [vmem:[#allocation5 + $0x98] sm:$0xff]
    %v83 = vld [vmem:[#allocation5 + $0xa0] sm:$0xff]
    %v84 = vld [vmem:[#allocation5 + $0xa8] sm:$0xff]
    %v85 = vld [vmem:[#allocation5 + $0xb0] sm:$0xff]
    %v86 = vld [vmem:[#allocation5 + $0xb8] sm:$0xff]
    %v87 = vld [vmem:[#allocation5 + $0xc0] sm:$0xff]
    %v88 = vld [vmem:[#allocation5 + $0xc8] sm:$0xff]
    %v89 = vld [vmem:[#allocation5 + $0xd0] sm:$0xff]
    %v90 = vld [vmem:[#allocation5 + $0xd8] sm:$0xff]
    %v91 = vld [vmem:[#allocation5 + $0xe0] sm:$0xff]
    %v92 = vld [vmem:[#allocation5 + $0xe8] sm:$0xff]
    %v93 = vld [vmem:[#allocation5 + $0xf0] sm:$0xff]
    %v94 = vld [vmem:[#allocation5 + $0xf8] sm:$0xff]
    %v95 = vld [vmem:[#allocation5 + $0x100] sm:$0xff]
    %v96 = vld [vmem:[#allocation5 + $0x108] sm:$0xff]
    %v97 = vld [vmem:[#allocation5 + $0x110] sm:$0xff]
    %v98 = vld [vmem:[#allocation5 + $0x118] sm:$0xff]
    %v99 = vld [vmem:[#allocation5 + $0x120] sm:$0xff]
    %v100 = vld [vmem:[#allocation5 + $0x128] sm:$0xff]
    %v101 = vld [vmem:[#allocation5 + $0x130] sm:$0xff]
    %v102 = vld [vmem:[#allocation5 + $0x138] sm:$0xff]
    %v103 = vld [vmem:[#allocation5 + $0x140] sm:$0xff]
    %v104 = vld [vmem:[#allocation5 + $0x148] sm:$0xff]
    %v105 = vld [vmem:[#allocation5 + $0x150] sm:$0xff]
    %v106 = vld [vmem:[#allocation5 + $0x158] sm:$0xff]
    %v107 = vld [vmem:[#allocation5 + $0x160] sm:$0xff]
    %v108 = vld [vmem:[#allocation5 + $0x168] sm:$0xff]
    %v109 = vld [vmem:[#allocation5 + $0x170] sm:$0xff]
    %v110 = vld [vmem:[#allocation5 + $0x178] sm:$0xff]
    %v111 = vld [vmem:[%s2] sm:$0x1]
    %v113 = vlaneseq
    %v114 = vshrl.u32 %v113, 7
    %v115 = vsub.s32 0, %v114
    %v116 = vrot.slane %v111, %v115
    %118 = vmatprep.subr.mxu0 0.0
    %119 = vmatpush1.msra.mxu0 %v78
    %120 = vmatprep.subr.mxu0 0.0
    %121 = vmatpush1.msra.mxu0 %v77
    %122 = vmatprep.subr.mxu0 0.0
    %123 = vmatpush1.msra.mxu0 %v76
    %124 = vmatprep.subr.mxu0 0.0
    %125 = vmatpush1.msra.mxu0 %v75
    %126 = vmatprep.subr.mxu0 0.0
    %127 = vmatpush1.msra.mxu0 %v74
    %128 = vmatprep.subr.mxu0 0.0
    %129 = vmatpush1.msra.mxu0 %v73
    %130 = vmatprep.subr.mxu0 0.0
    %131 = vmatpush1.msra.mxu0 %v72
    %132 = vmatprep.subr.mxu0 0.0
    %133 = vmatpush1.msra.mxu0 %v71
    %134 = vmatprep.subr.mxu0 0.0
    %135 = vmatpush1.msra.mxu0 %v70
    %136 = vmatprep.subr.mxu0 0.0
    %137 = vmatpush1.msra.mxu0 %v69
    %138 = vmatprep.subr.mxu0 0.0
    %139 = vmatpush1.msra.mxu0 %v68
    %140 = vmatprep.subr.mxu0 0.0
    %141 = vmatpush1.msra.mxu0 %v67
    %142 = vmatprep.subr.mxu0 0.0
    %143 = vmatpush1.msra.mxu0 %v66
    %144 = vmatprep.subr.mxu0 0.0
    %145 = vmatpush1.msra.mxu0 %v65
    %146 = vmatprep.subr.mxu0 0.0
    %147 = vmatpush1.msra.mxu0 %v64
    %148 = vmatprep.subr.mxu0 0.0
    %149 = vmatpush1.msra.mxu0 %v63
    %150 = vmatprep.subr.mxu0 0.0
    %151 = vmatpush2.msra.mxu0 %v94
    %152 = vmatprep.subr.mxu0 0.0
    %153 = vmatpush2.msra.mxu0 %v93
    %154 = vmatprep.subr.mxu0 0.0
    %155 = vmatpush2.msra.mxu0 %v92
    %156 = vmatprep.subr.mxu0 0.0
    %157 = vmatpush2.msra.mxu0 %v91
    %158 = vmatprep.subr.mxu0 0.0
    %159 = vmatpush2.msra.mxu0 %v90
    %160 = vmatprep.subr.mxu0 0.0
    %161 = vmatpush2.msra.mxu0 %v89
    %162 = vmatprep.subr.mxu0 0.0
    %163 = vmatpush2.msra.mxu0 %v88
    %164 = vmatprep.subr.mxu0 0.0
    %165 = vmatpush2.msra.mxu0 %v87
    %166 = vmatprep.subr.mxu0 0.0
    %167 = vmatpush2.msra.mxu0 %v86
    %168 = vmatprep.subr.mxu0 0.0
    %169 = vmatpush2.msra.mxu0 %v85
    %170 = vmatprep.subr.mxu0 0.0
    %171 = vmatpush2.msra.mxu0 %v84
    %172 = vmatprep.subr.mxu0 0.0
    %173 = vmatpush2.msra.mxu0 %v83
    %174 = vmatprep.subr.mxu0 0.0
    %175 = vmatpush2.msra.mxu0 %v82
    %176 = vmatprep.subr.mxu0 0.0
    %177 = vmatpush2.msra.mxu0 %v81
    %178 = vmatprep.subr.mxu0 0.0
    %179 = vmatpush2.msra.mxu0 %v80
    %180 = vmatprep.subr.mxu0 0.0
    %181 = vmatpush2.msra.mxu0 %v79
    %182 = vmatprep.mubr.f32.mxu0 %v61
    %183 = vmatmul.mubr.f32.gmra.mxu0 %v60
    %v184 = vpop.f32.mrf.mxu0
    %v185 = vadd.f32 %v116, %v184
    %v186 = vpop.f32.mrf.mxu0
    %187 = vdwg.mxu0
    %188 = vmatprep.subr.mxu0 0.0
    %189 = vmatpush1.msra.mxu0 %v110
    %190 = vmatprep.subr.mxu0 0.0
    %191 = vmatpush1.msra.mxu0 %v109
    %192 = vmatprep.subr.mxu0 0.0
    %193 = vmatpush1.msra.mxu0 %v108
    %194 = vmatprep.subr.mxu0 0.0
    %195 = vmatpush1.msra.mxu0 %v107
    %196 = vmatprep.subr.mxu0 0.0
    %197 = vmatpush1.msra.mxu0 %v106
    %198 = vmatprep.subr.mxu0 0.0
    %199 = vmatpush1.msra.mxu0 %v105
    %200 = vmatprep.subr.mxu0 0.0
    %201 = vmatpush1.msra.mxu0 %v104
    %202 = vmatprep.subr.mxu0 0.0
    %203 = vmatpush1.msra.mxu0 %v103
    %204 = vmatprep.subr.mxu0 0.0
    %205 = vmatpush1.msra.mxu0 %v102
    %206 = vmatprep.subr.mxu0 0.0
    %207 = vmatpush1.msra.mxu0 %v101
    %208 = vmatprep.subr.mxu0 0.0
    %209 = vmatpush1.msra.mxu0 %v100
    %210 = vmatprep.subr.mxu0 0.0
    %211 = vmatpush1.msra.mxu0 %v99
    %212 = vmatprep.subr.mxu0 0.0
    %213 = vmatpush1.msra.mxu0 %v98
    %214 = vmatprep.subr.mxu0 0.0
    %215 = vmatpush1.msra.mxu0 %v97
    %216 = vmatprep.subr.mxu0 0.0
    %217 = vmatpush1.msra.mxu0 %v96
    %218 = vmatprep.subr.mxu0 0.0
    %219 = vmatpush1.msra.mxu0 %v95
    %220 = vmatprep.subr.mxu0 0.0
    %221 = vmatpush2.msra.mxu0 0.0
    %222 = vmatprep.subr.mxu0 0.0
    %223 = vmatpush2.msra.mxu0 0.0
    %224 = vmatprep.subr.mxu0 0.0
    %225 = vmatpush2.msra.mxu0 0.0
    %226 = vmatprep.subr.mxu0 0.0
    %227 = vmatpush2.msra.mxu0 0.0
    %228 = vmatprep.subr.mxu0 0.0
    %229 = vmatpush2.msra.mxu0 0.0
    %230 = vmatprep.subr.mxu0 0.0
    %231 = vmatpush2.msra.mxu0 0.0
    %232 = vmatprep.subr.mxu0 0.0
    %233 = vmatpush2.msra.mxu0 0.0
    %234 = vmatprep.subr.mxu0 0.0
    %235 = vmatpush2.msra.mxu0 0.0
    %236 = vmatprep.subr.mxu0 0.0
    %237 = vmatpush2.msra.mxu0 0.0
    %238 = vmatprep.subr.mxu0 0.0
    %239 = vmatpush2.msra.mxu0 0.0
    %240 = vmatprep.subr.mxu0 0.0
    %241 = vmatpush2.msra.mxu0 0.0
    %242 = vmatprep.subr.mxu0 0.0
    %243 = vmatpush2.msra.mxu0 0.0
    %244 = vmatprep.subr.mxu0 0.0
    %245 = vmatpush2.msra.mxu0 0.0
    %246 = vmatprep.subr.mxu0 0.0
    %247 = vmatpush2.msra.mxu0 0.0
    %248 = vmatprep.subr.mxu0 0.0
    %249 = vmatpush2.msra.mxu0 0.0
    %250 = vmatprep.subr.mxu0 0.0
    %251 = vmatpush2.msra.mxu0 0.0
    %252 = vmatprep.mubr.f32.mxu0 0.0
    %253 = vmatmul.mubr.f32.gmra.mxu0 %v62
    %v254 = vpop.f32.mrf.mxu0
    %v255 = vadd.f32 %v185, %v254
    %v256 = vpop.f32.mrf.mxu0
    %257 = vdwg.mxu0
    %v258 = vmax.f32 %v255, 0.0
    %v259 = vld [vmem:[#allocation7] sm:$0xff]
    %v260 = vld [vmem:[#allocation7 + $0x8] sm:$0xff]
    %v261 = vld [vmem:[#allocation7 + $0x10] sm:$0xff]
    %v262 = vld [vmem:[#allocation7 + $0x18] sm:$0xff]
    %v263 = vld [vmem:[#allocation7 + $0x20] sm:$0xff]
    %v264 = vld [vmem:[#allocation7 + $0x28] sm:$0xff]
    %v265 = vld [vmem:[#allocation7 + $0x30] sm:$0xff]
    %v266 = vld [vmem:[#allocation7 + $0x38] sm:$0xff]
    %v267 = vld [vmem:[#allocation7 + $0x40] sm:$0xff]
    %v268 = vld [vmem:[#allocation7 + $0x48] sm:$0xff]
    %v269 = vld [vmem:[#allocation7 + $0x50] sm:$0xff]
    %v270 = vld [vmem:[#allocation7 + $0x58] sm:$0xff]
    %v271 = vld [vmem:[#allocation7 + $0x60] sm:$0xff]
    %v272 = vld [vmem:[#allocation7 + $0x68] sm:$0xff]
    %v273 = vld [vmem:[#allocation7 + $0x70] sm:$0xff]
    %v274 = vld [vmem:[#allocation7 + $0x78] sm:$0xff]
    %v275 = vld [vmem:[%s4] sm:$0x1]
    %v277 = vlaneseq
    %v278 = vshrl.u32 %v277, 7
    %v279 = vsub.s32 0, %v278
    %v280 = vrot.slane %v275, %v279
    %282 = vmatprep.subr.mxu0 0.0
    %283 = vmatpush1.msra.mxu0 %v274
    %284 = vmatprep.subr.mxu0 0.0
    %285 = vmatpush1.msra.mxu0 %v273
    %286 = vmatprep.subr.mxu0 0.0
    %287 = vmatpush1.msra.mxu0 %v272
    %288 = vmatprep.subr.mxu0 0.0
    %289 = vmatpush1.msra.mxu0 %v271
    %290 = vmatprep.subr.mxu0 0.0
    %291 = vmatpush1.msra.mxu0 %v270
    %292 = vmatprep.subr.mxu0 0.0
    %293 = vmatpush1.msra.mxu0 %v269
    %294 = vmatprep.subr.mxu0 0.0
    %295 = vmatpush1.msra.mxu0 %v268
    %296 = vmatprep.subr.mxu0 0.0
    %297 = vmatpush1.msra.mxu0 %v267
    %298 = vmatprep.subr.mxu0 0.0
    %299 = vmatpush1.msra.mxu0 %v266
    %300 = vmatprep.subr.mxu0 0.0
    %301 = vmatpush1.msra.mxu0 %v265
    %302 = vmatprep.subr.mxu0 0.0
    %303 = vmatpush1.msra.mxu0 %v264
    %304 = vmatprep.subr.mxu0 0.0
    %305 = vmatpush1.msra.mxu0 %v263
    %306 = vmatprep.subr.mxu0 0.0
    %307 = vmatpush1.msra.mxu0 %v262
    %308 = vmatprep.subr.mxu0 0.0
    %309 = vmatpush1.msra.mxu0 %v261
    %310 = vmatprep.subr.mxu0 0.0
    %311 = vmatpush1.msra.mxu0 %v260
    %312 = vmatprep.subr.mxu0 0.0
    %313 = vmatpush1.msra.mxu0 %v259
    %314 = vmatprep.subr.mxu0 0.0
    %315 = vmatpush2.msra.mxu0 0.0
    %316 = vmatprep.subr.mxu0 0.0
    %317 = vmatpush2.msra.mxu0 0.0
    %318 = vmatprep.subr.mxu0 0.0
    %319 = vmatpush2.msra.mxu0 0.0
    %320 = vmatprep.subr.mxu0 0.0
    %321 = vmatpush2.msra.mxu0 0.0
    %322 = vmatprep.subr.mxu0 0.0
    %323 = vmatpush2.msra.mxu0 0.0
    %324 = vmatprep.subr.mxu0 0.0
    %325 = vmatpush2.msra.mxu0 0.0
    %326 = vmatprep.subr.mxu0 0.0
    %327 = vmatpush2.msra.mxu0 0.0
    %328 = vmatprep.subr.mxu0 0.0
    %329 = vmatpush2.msra.mxu0 0.0
    %330 = vmatprep.subr.mxu0 0.0
    %331 = vmatpush2.msra.mxu0 0.0
    %332 = vmatprep.subr.mxu0 0.0
    %333 = vmatpush2.msra.mxu0 0.0
    %334 = vmatprep.subr.mxu0 0.0
    %335 = vmatpush2.msra.mxu0 0.0
    %336 = vmatprep.subr.mxu0 0.0
    %337 = vmatpush2.msra.mxu0 0.0
    %338 = vmatprep.subr.mxu0 0.0
    %339 = vmatpush2.msra.mxu0 0.0
    %340 = vmatprep.subr.mxu0 0.0
    %341 = vmatpush2.msra.mxu0 0.0
    %342 = vmatprep.subr.mxu0 0.0
    %343 = vmatpush2.msra.mxu0 0.0
    %344 = vmatprep.subr.mxu0 0.0
    %345 = vmatpush2.msra.mxu0 0.0
    %346 = vmatprep.mubr.f32.mxu0 0.0
    %347 = vmatmul.mubr.f32.gmra.mxu0 %v258
    %v348 = vpop.f32.mrf.mxu0
    %v349 = vadd.f32 %v280, %v348
    %v350 = vpop.f32.mrf.mxu0
    %351 = vdwg.mxu0
    %352 = vst [vmem:[#allocation8] sm:$0xff] %v349
    // Predicated region
    $region34: #{tpu_custom_call.1} parent=1 // pred_check
      _
    $region35: #{tpu_custom_call.1} parent=1 // pred_check_branch
      %354 = sbr.rel (0) target = $region37
    $region36: #{tpu_custom_call.1} parent=1 // pred_region
      %s356 = ssub.s32 128, 128
      %357 = vsyncadd [#allocation4], %s356
      %s359 = sshll.u32 [#allocation8], 4
      %s360 = int_to_ptr.vmem [resolvable:$true] %s359
      %362 = dma.vmem_to_hbm [thread:$0]  %s360, 128, %s5, [#allocation4]
    $region37: #{tpu_custom_call.1} parent=1 // pred_fallthru
      _
    // Predicated region
    $region38: #{tpu_custom_call.1} parent=1 // pred_check
      _
    $region39: #{tpu_custom_call.1} parent=1 // pred_check_branch
      %364 = sbr.rel (0) target = $region41
    $region40: #{tpu_custom_call.1} parent=1 // pred_region
      %365 = dma.done [#allocation4], 128
    $region41: #{tpu_custom_call.1} parent=1 // pred_fallthru
      _
    %366 = vsyncpa [#allocation3], 1
    %367 = vsyncpa [#allocation6], 1
    %368 = vsyncpa [#allocation4], 1

</llo_original>
